<compile_context>
chip_gen: v6e
topology: v6e:2x2x1
jax: 0.10.0
libtpu: 0.0.40
codegen_flags: <defaults>
</compile_context>

<pallas_src>
import functools

import jax
import jax.numpy as jnp
from jax.experimental import pallas as pl
from jax.experimental.pallas import tpu as pltpu


HIDDEN = (256, 256)   # approximator_hidden_sizes={'mlp': (256, 256)}
LANE = 128            # TPU lane width; output padded to a multiple of this
MAX_TILE_B = 1024     # max batch rows per grid step (per perf review)


# ----------------------------------------------------------------------------
# Pallas kernel: full 3-layer MLP forward for ALL C critics on ONE batch tile.
# Weights are (C, in, out) bf16 and grid-invariant (stay resident in VMEM);
# biases are (C, 1, out) f32; output block is (C, tile_b, out_pad) f32.
# ----------------------------------------------------------------------------
def _mlp_kernel(x_ref, w1_ref, b1_ref, w2_ref, b2_ref, w3_ref, b3_ref, o_ref):
    x = x_ref[...]                                   # (tb, S) bf16
    n_critics = o_ref.shape[0]                       # static: 1 or 2
    for c in range(n_critics):                       # unrolled
        # layer 1: Linear (bf16 MXU, f32 acc) + bias + ReLU in f32
        h1 = jnp.dot(x, w1_ref[c], preferred_element_type=jnp.float32) + b1_ref[c]
        h1 = jnp.maximum(h1, 0.0).astype(jnp.bfloat16)
        # layer 2
        h2 = jnp.dot(h1, w2_ref[c], preferred_element_type=jnp.float32) + b2_ref[c]
        h2 = jnp.maximum(h2, 0.0).astype(jnp.bfloat16)
        # output layer: Linear + Identity (approximator_out_activation)
        o_ref[c] = (
            jnp.dot(h2, w3_ref[c], preferred_element_type=jnp.float32) + b3_ref[c]
        ).astype(o_ref.dtype)


def _pick_batch_tile(batch):
    """Return (tile_b, padded_batch).

    Small batches run as one full-batch block.  Large batches use fixed
    MAX_TILE_B tiles and the batch is zero-padded up to a multiple of the tile
    (rows are sliced off after the call) so VMEM per block stays bounded.
    """
    if batch <= MAX_TILE_B:
        return batch, batch
    padded = ((batch + MAX_TILE_B - 1) // MAX_TILE_B) * MAX_TILE_B
    return MAX_TILE_B, padded


def _critic_bank_pallas(state, w1, b1, w2, b2, w3, b3):
    """Run C critics' MLPs on `state` via one pallas_call.

    Weights stacked (C, in, out) bf16; biases (C, 1, out) f32.
    Returns (C, padded_B, out_pad) float32.
    """
    C, state_dim, h1d = w1.shape
    h2d = w2.shape[2]
    out_pad = w3.shape[2]
    batch = state.shape[0]

    tile_b, pad_b = _pick_batch_tile(batch)
    if pad_b != batch:
        state = jnp.pad(state, ((0, pad_b - batch), (0, 0)))
    x = state.astype(jnp.bfloat16)
    n_btiles = pad_b // tile_b

    # TODO(synk): on v7x, pltpu.CORE_PARALLEL on the batch axis (or pl.core_map)
    # would make the 2-TensorCore split explicit; "parallel" is the portable
    # choice that compiles on every chip generation.
    return pl.pallas_call(
        _mlp_kernel,
        out_shape=jax.ShapeDtypeStruct((C, pad_b, out_pad), jnp.float32),
        grid_spec=pltpu.PrefetchScalarGridSpec(
            num_scalar_prefetch=0,
            grid=(n_btiles,),
            in_specs=[
                pl.BlockSpec((tile_b, state_dim), lambda i: (i, 0)),
                # grid-invariant index_maps: weights/biases stay in VMEM
                pl.BlockSpec((C, state_dim, h1d), lambda i: (0, 0, 0)),
                pl.BlockSpec((C, 1, h1d), lambda i: (0, 0, 0)),
                pl.BlockSpec((C, h1d, h2d), lambda i: (0, 0, 0)),
                pl.BlockSpec((C, 1, h2d), lambda i: (0, 0, 0)),
                pl.BlockSpec((C, h2d, out_pad), lambda i: (0, 0, 0)),
                pl.BlockSpec((C, 1, out_pad), lambda i: (0, 0, 0)),
            ],
            out_specs=pl.BlockSpec((C, tile_b, out_pad), lambda i: (0, i, 0)),
        ),
        compiler_params=pltpu.CompilerParams(
            dimension_semantics=("parallel",),
            vmem_limit_bytes=32 * 1024 * 1024,
        ),
    )(x, w1, b1, w2, b2, w3, b3)


@functools.partial(jax.jit, static_argnums=(1,))
def _forward_apply(state, action_dim, w1, b1, w2, b2, w3, b3):
    """Critic1 only: kernel + squeeze + row/action slice, all inside jit."""
    q = _critic_bank_pallas(state, w1, b1, w2, b2, w3, b3)   # (1, padB, out_pad)
    return q[0, : state.shape[0], :action_dim]


@functools.partial(jax.jit, static_argnums=(1,))
def _twin_apply(state, action_dim, w1, b1, w2, b2, w3, b3):
    """Both critics in one dispatch; slicing done inside jit."""
    q = _critic_bank_pallas(state, w1, b1, w2, b2, w3, b3)   # (2, padB, out_pad)
    b = state.shape[0]
    # TODO(synk): for very large batches, downstream consumers (gather Q[.,a],
    # max over actions) should be fused here instead of materializing the slice.
    return q[0, :b, :action_dim], q[1, :b, :action_dim]


# ----------------------------------------------------------------------------
# Parameter construction (deterministic, PyTorch-Linear-like uniform init).
# The final layer is zero-padded to `out_pad` columns for lane-dense stores.
# ----------------------------------------------------------------------------
def _init_linear(key, fan_in, fan_out, out_pad=None):
    kw, kb = jax.random.split(key)
    bound = 1.0 / jnp.sqrt(jnp.float32(fan_in))
    w = jax.random.uniform(kw, (fan_in, fan_out), jnp.float32, -bound, bound)
    b = jax.random.uniform(kb, (1, fan_out), jnp.float32, -bound, bound)
    if out_pad is not None and out_pad > fan_out:
        w = jnp.pad(w, ((0, 0), (0, out_pad - fan_out)))
        b = jnp.pad(b, ((0, 0), (0, out_pad - fan_out)))
    return w, b


def init_critic_params(key, state_dim, action_dim, out_pad):
    k1, k2, k3 = jax.random.split(key, 3)
    w1, b1 = _init_linear(k1, state_dim, HIDDEN[0])
    w2, b2 = _init_linear(k2, HIDDEN[0], HIDDEN[1])
    w3, b3 = _init_linear(k3, HIDDEN[1], action_dim, out_pad=out_pad)
    return (w1, b1, w2, b2, w3, b3)


class DiscreteTwinQCritic:
    """JAX/Pallas port of the PyTorch DiscreteTwinQCritic forward pass."""

    def __init__(self, state_dim, action_dim, key):
        self.action_dim = action_dim
        out_pad = ((action_dim + LANE - 1) // LANE) * LANE
        k1, k2 = jax.random.split(key)
        p1 = init_critic_params(k1, state_dim, action_dim, out_pad)
        p2 = init_critic_params(k2, state_dim, action_dim, out_pad)
        # Twin bank: each parameter stacked on a leading critic axis (2,in,out).
        twin_f32 = tuple(jnp.stack([a, b]) for a, b in zip(p1, p2))
        # Kernel dtypes: bf16 weights (MXU operands), f32 biases (f32 epilogue).
        w1, b1, w2, b2, w3, b3 = twin_f32
        self._twin = (
            w1.astype(jnp.bfloat16), b1,
            w2.astype(jnp.bfloat16), b2,
            w3.astype(jnp.bfloat16), b3,
        )
        # Critic1-only bank (1, in, out) precomputed once for forward().
        self._q1 = tuple(p[:1] for p in self._twin)

    def forward(self, state):
        # forward(state) delegates to critic1 only (matches PyTorch module).
        return _forward_apply(state, self.action_dim, *self._q1)

    def get_twin(self, state):
        # PyTorch get_twin indexes [0] on the approximator output; with an
        # Identity output activation the approximator returns the Q tensor
        # directly, so both Q tensors are returned here.
        return _twin_apply(state, self.action_dim, *self._twin)


# TODO(synk): configure_optimizer (Adam) / configure_criterion (SmoothL1Loss)
#             are training utilities, not forward-pass ops; not ported.


def _ref_mlp(state, twin_params, critic_idx, action_dim):
    """Pure-JAX reference using the same bf16/f32 mixed precision."""
    w1, b1, w2, b2, w3, b3 = (p[critic_idx] for p in twin_params)
    x = state.astype(jnp.bfloat16)
    h1 = jnp.maximum(jnp.dot(x, w1, preferred_element_type=jnp.float32) + b1, 0.0)
    h1 = h1.astype(jnp.bfloat16)
    h2 = jnp.maximum(jnp.dot(h1, w2, preferred_element_type=jnp.float32) + b2, 0.0)
    h2 = h2.astype(jnp.bfloat16)
    out = jnp.dot(h2, w3, preferred_element_type=jnp.float32) + b3
    return out[:, :action_dim]


if __name__ == "__main__":
    key = jax.random.PRNGKey(0)
    k_params, k_state, k_big = jax.random.split(key, 3)

    batch, state_dim, action_dim = 8, 32, 8
    critic = DiscreteTwinQCritic(state_dim, action_dim, k_params)

    state = jax.random.normal(k_state, (batch, state_dim), jnp.float32)

    q1 = critic.forward(state)
    q1_twin, q2_twin = critic.get_twin(state)
    jax.block_until_ready((q1, q1_twin, q2_twin))

    assert q1.shape == (batch, action_dim)
    assert q1_twin.shape == (batch, action_dim)
    assert q2_twin.shape == (batch, action_dim)

    # forward must equal critic1 branch of get_twin
    assert bool(jnp.allclose(q1, q1_twin, atol=1e-4, rtol=1e-4))

    # check against a pure-JAX reference (same bf16/f32 mixed precision)
    ref1 = _ref_mlp(state, critic._twin, 0, action_dim)
    ref2 = _ref_mlp(state, critic._twin, 1, action_dim)
    assert bool(jnp.allclose(q1_twin, ref1, atol=5e-2, rtol=5e-2))
    assert bool(jnp.allclose(q2_twin, ref2, atol=5e-2, rtol=5e-2))

    # exercise the tiled + padded large-batch path (B not a multiple of tile)
    big_batch = MAX_TILE_B + 100
    big_state = jax.random.normal(k_big, (big_batch, state_dim), jnp.float32)
    q1_big = critic.forward(big_state)
    jax.block_until_ready(q1_big)
    assert q1_big.shape == (big_batch, action_dim)
    ref_big = _ref_mlp(big_state, critic._twin, 0, action_dim)
    assert bool(jnp.allclose(q1_big, ref_big, atol=5e-2, rtol=5e-2))

    print("KERNEL_OK")
</pallas_src>

<mosaic_0001>
module attributes {stable_mosaic.version = 11 : i64} {
  func.func @_mlp_kernel(%arg0: i32, %arg1: memref<8x32xbf16, #tpu.memory_space<vmem>>, %arg2: memref<1x32x256xbf16, #tpu.memory_space<vmem>>, %arg3: memref<1x1x256xf32, #tpu.memory_space<vmem>>, %arg4: memref<1x256x256xbf16, #tpu.memory_space<vmem>>, %arg5: memref<1x1x256xf32, #tpu.memory_space<vmem>>, %arg6: memref<1x256x128xbf16, #tpu.memory_space<vmem>>, %arg7: memref<1x1x128xf32, #tpu.memory_space<vmem>>, %arg8: memref<1x8x128xf32, #tpu.memory_space<vmem>>) attributes {dimension_semantics = [#tpu.dimension_semantics<parallel>], iteration_bounds = array<i64: 1>, scalar_prefetch = 0 : i64, scratch_operands = 0 : i64, tpu.core_type = #tpu.core_type<tc>, window_params = [{transform_indices = @transform_0, window_bounds = array<i64: 8, 32>}, {pipeline_mode = #tpu.pipeline_mode<synchronous>, transform_indices = @transform_1, window_bounds = array<i64: 1, 32, 256>}, {pipeline_mode = #tpu.pipeline_mode<synchronous>, transform_indices = @transform_2, window_bounds = array<i64: 1, 1, 256>}, {pipeline_mode = #tpu.pipeline_mode<synchronous>, transform_indices = @transform_3, window_bounds = array<i64: 1, 256, 256>}, {pipeline_mode = #tpu.pipeline_mode<synchronous>, transform_indices = @transform_4, window_bounds = array<i64: 1, 1, 256>}, {pipeline_mode = #tpu.pipeline_mode<synchronous>, transform_indices = @transform_5, window_bounds = array<i64: 1, 256, 128>}, {pipeline_mode = #tpu.pipeline_mode<synchronous>, transform_indices = @transform_6, window_bounds = array<i64: 1, 1, 128>}, {transform_indices = @transform_7, window_bounds = array<i64: 1, 8, 128>}]} {
    %c0 = arith.constant 0 : index
    %c0_0 = arith.constant 0 : index
    %0 = vector.load %arg1[%c0, %c0_0] : memref<8x32xbf16, #tpu.memory_space<vmem>>, vector<8x32xbf16>
    %c0_1 = arith.constant 0 : index
    %c0_2 = arith.constant 0 : index
    %c0_3 = arith.constant 0 : index
    %1 = vector.load %arg2[%c0_1, %c0_2, %c0_3] : memref<1x32x256xbf16, #tpu.memory_space<vmem>>, vector<1x32x256xbf16>
    %2 = vector.shape_cast %1 : vector<1x32x256xbf16> to vector<32x256xbf16>
    %cst = arith.constant dense<0.000000e+00> : vector<8x256xf32>
    %3 = tpu.matmul %0, %2, %cst {dimension_numbers = #tpu.dot_dimension_numbers<[1], [0], [0], [1], [0, 0, 1, 1], [], []>} : vector<8x32xbf16>, vector<32x256xbf16>, vector<8x256xf32> -> vector<8x256xf32>
    %c0_4 = arith.constant 0 : index
    %c0_5 = arith.constant 0 : index
    %c0_6 = arith.constant 0 : index
    %4 = vector.load %arg3[%c0_4, %c0_5, %c0_6] : memref<1x1x256xf32, #tpu.memory_space<vmem>>, vector<1x1x256xf32>
    %5 = vector.shape_cast %4 : vector<1x1x256xf32> to vector<1x256xf32>
    %6 = vector.broadcast %5 : vector<1x256xf32> to vector<8x256xf32>
    %7 = arith.addf %3, %6 : vector<8x256xf32>
    %cst_7 = arith.constant 0.000000e+00 : f32
    %8 = vector.broadcast %cst_7 : f32 to vector<8x256xf32>
    %9 = arith.maximumf %7, %8 : vector<8x256xf32>
    %10 = arith.truncf %9 : vector<8x256xf32> to vector<8x256xbf16>
    %c0_8 = arith.constant 0 : index
    %c0_9 = arith.constant 0 : index
    %c0_10 = arith.constant 0 : index
    %11 = vector.load %arg4[%c0_8, %c0_9, %c0_10] : memref<1x256x256xbf16, #tpu.memory_space<vmem>>, vector<1x256x256xbf16>
    %12 = vector.shape_cast %11 : vector<1x256x256xbf16> to vector<256x256xbf16>
    %cst_11 = arith.constant dense<0.000000e+00> : vector<8x256xf32>
    %13 = tpu.matmul %10, %12, %cst_11 {dimension_numbers = #tpu.dot_dimension_numbers<[1], [0], [0], [1], [0, 0, 1, 1], [], []>} : vector<8x256xbf16>, vector<256x256xbf16>, vector<8x256xf32> -> vector<8x256xf32>
    %c0_12 = arith.constant 0 : index
    %c0_13 = arith.constant 0 : index
    %c0_14 = arith.constant 0 : index
    %14 = vector.load %arg5[%c0_12, %c0_13, %c0_14] : memref<1x1x256xf32, #tpu.memory_space<vmem>>, vector<1x1x256xf32>
    %15 = vector.shape_cast %14 : vector<1x1x256xf32> to vector<1x256xf32>
    %16 = vector.broadcast %15 : vector<1x256xf32> to vector<8x256xf32>
    %17 = arith.addf %13, %16 : vector<8x256xf32>
    %cst_15 = arith.constant 0.000000e+00 : f32
    %18 = vector.broadcast %cst_15 : f32 to vector<8x256xf32>
    %19 = arith.maximumf %17, %18 : vector<8x256xf32>
    %20 = arith.truncf %19 : vector<8x256xf32> to vector<8x256xbf16>
    %c0_16 = arith.constant 0 : index
    %c0_17 = arith.constant 0 : index
    %c0_18 = arith.constant 0 : index
    %21 = vector.load %arg6[%c0_16, %c0_17, %c0_18] : memref<1x256x128xbf16, #tpu.memory_space<vmem>>, vector<1x256x128xbf16>
    %22 = vector.shape_cast %21 : vector<1x256x128xbf16> to vector<256x128xbf16>
    %cst_19 = arith.constant dense<0.000000e+00> : vector<8x128xf32>
    %23 = tpu.matmul %20, %22, %cst_19 {dimension_numbers = #tpu.dot_dimension_numbers<[1], [0], [0], [1], [0, 0, 1, 1], [], []>} : vector<8x256xbf16>, vector<256x128xbf16>, vector<8x128xf32> -> vector<8x128xf32>
    %c0_20 = arith.constant 0 : index
    %c0_21 = arith.constant 0 : index
    %c0_22 = arith.constant 0 : index
    %24 = vector.load %arg7[%c0_20, %c0_21, %c0_22] : memref<1x1x128xf32, #tpu.memory_space<vmem>>, vector<1x1x128xf32>
    %25 = vector.shape_cast %24 : vector<1x1x128xf32> to vector<1x128xf32>
    %26 = vector.broadcast %25 : vector<1x128xf32> to vector<8x128xf32>
    %27 = arith.addf %23, %26 : vector<8x128xf32>
    %c0_23 = arith.constant 0 : index
    %c0_24 = arith.constant 0 : index
    %c0_25 = arith.constant 0 : index
    %28 = vector.load %arg8[%c0_23, %c0_24, %c0_25] : memref<1x8x128xf32, #tpu.memory_space<vmem>>, vector<1x8x128xf32>
    %29 = vector.shape_cast %28 : vector<1x8x128xf32> to vector<8x128xf32>
    %30 = vector.shape_cast %27 : vector<8x128xf32> to vector<1x8x128xf32>
    tpu.vector_store %arg8[%c0_23, %c0_24, %c0_25], %30 {strides = array<i32>} : memref<1x8x128xf32, #tpu.memory_space<vmem>>, vector<1x8x128xf32>,
    return
  }
  func.func @transform_0(%arg0: i32) -> (i32, i32) {
    %c0_i32 = arith.constant 0 : i32
    %c0_i32_0 = arith.constant 0 : i32
    return %arg0, %c0_i32 : i32, i32
  }
  func.func @transform_1(%arg0: i32) -> (i32, i32, i32) {
    %c0_i32 = arith.constant 0 : i32
    %c0_i32_0 = arith.constant 0 : i32
    %c0_i32_1 = arith.constant 0 : i32
    %c0_i32_2 = arith.constant 0 : i32
    return %c0_i32, %c0_i32_0, %c0_i32_1 : i32, i32, i32
  }
  func.func @transform_2(%arg0: i32) -> (i32, i32, i32) {
    %c0_i32 = arith.constant 0 : i32
    %c0_i32_0 = arith.constant 0 : i32
    %c0_i32_1 = arith.constant 0 : i32
    %c0_i32_2 = arith.constant 0 : i32
    return %c0_i32, %c0_i32_0, %c0_i32_1 : i32, i32, i32
  }
  func.func @transform_3(%arg0: i32) -> (i32, i32, i32) {
    %c0_i32 = arith.constant 0 : i32
    %c0_i32_0 = arith.constant 0 : i32
    %c0_i32_1 = arith.constant 0 : i32
    %c0_i32_2 = arith.constant 0 : i32
    return %c0_i32, %c0_i32_0, %c0_i32_1 : i32, i32, i32
  }
  func.func @transform_4(%arg0: i32) -> (i32, i32, i32) {
    %c0_i32 = arith.constant 0 : i32
    %c0_i32_0 = arith.constant 0 : i32
    %c0_i32_1 = arith.constant 0 : i32
    %c0_i32_2 = arith.constant 0 : i32
    return %c0_i32, %c0_i32_0, %c0_i32_1 : i32, i32, i32
  }
  func.func @transform_5(%arg0: i32) -> (i32, i32, i32) {
    %c0_i32 = arith.constant 0 : i32
    %c0_i32_0 = arith.constant 0 : i32
    %c0_i32_1 = arith.constant 0 : i32
    %c0_i32_2 = arith.constant 0 : i32
    return %c0_i32, %c0_i32_0, %c0_i32_1 : i32, i32, i32
  }
  func.func @transform_6(%arg0: i32) -> (i32, i32, i32) {
    %c0_i32 = arith.constant 0 : i32
    %c0_i32_0 = arith.constant 0 : i32
    %c0_i32_1 = arith.constant 0 : i32
    %c0_i32_2 = arith.constant 0 : i32
    return %c0_i32, %c0_i32_0, %c0_i32_1 : i32, i32, i32
  }
  func.func @transform_7(%arg0: i32) -> (i32, i32, i32) {
    %c0_i32 = arith.constant 0 : i32
    %c0_i32_0 = arith.constant 0 : i32
    %c0_i32_1 = arith.constant 0 : i32
    return %c0_i32, %arg0, %c0_i32_0 : i32, i32, i32
  }
}

</mosaic_0001>

<llo_original>
// kernel: _forward_apply.1
$region0: #{_forward_apply.1}
  #allocation0 [shape = 'u32[]', space=smem, size = 0x4, offset = 0x4, fixed_abs, tag = 'smem constant byte address 0x4 - core index']
  #allocation1 [shape = 'u32[144,128]{1,0:T(1,128)}', space=vmem, size = 0x12000, scoped, tag = 'internal scratch']
  %s0 = inlined_call_operand.vmem [shape: bf16[8,32], index: 0, kind: input, shape index: {}]
  %s1 = inlined_call_operand.hbm [shape: bf16[1,32,256], index: 1, kind: input, shape index: {}]
  %s2 = inlined_call_operand.vmem [shape: f32[1,1,256], index: 2, kind: input, shape index: {}]
  %s3 = inlined_call_operand.hbm [shape: bf16[1,256,256], index: 3, kind: input, shape index: {}]
  %s4 = inlined_call_operand.vmem [shape: f32[1,1,256], index: 4, kind: input, shape index: {}]
  %s5 = inlined_call_operand.hbm [shape: bf16[1,256,128], index: 5, kind: input, shape index: {}]
  %s6 = inlined_call_operand.vmem [shape: f32[1,1,128], index: 6, kind: input, shape index: {}]
  %s7 = inlined_call_operand.vmem [shape: f32[1,8,128], index: 7, kind: output, shape index: {}]
  %s8 = sld [smem:[#allocation0]]
  $region50: #{_forward_apply.1} parent=0
    _
  %s10 = ssub.s32 1, %s8
  %s11 = scalar_select 0, %s10, %s8
  $region1: #{_forward_apply.1} parent=0
    #allocation2 [shape = 'u8[16384]{0}', space=vmem, size = 0x4000, scoped, tag = 'input window, operand 1, single buffered']
    #allocation3 [shape = 's32[1]{0}', space=sflag, size = 0x4, scoped, tag = 'scoped memory for _forward_apply.1']
    #allocation4 [shape = 'u8[131072]{0}', space=vmem, size = 0x20000, scoped, tag = 'input window, operand 3, single buffered']
    #allocation5 [shape = 's32[1]{0}', space=sflag, size = 0x4, scoped, tag = 'scoped memory for _forward_apply.1']
    #allocation6 [shape = 'u8[65536]{0}', space=vmem, size = 0x10000, scoped, tag = 'input window, operand 5, single buffered']
    %12 = vsyncpa [#allocation3], 0
    %13 = vsyncpa [#allocation5], 0
    // Predicated region
    $region2: #{_forward_apply.1} parent=1 // pred_check
      _
    $region3: #{_forward_apply.1} parent=1 // pred_check_branch
      %15 = sbr.rel (0) target = $region5
    $region4: #{_forward_apply.1} parent=1 // pred_region
      _
    $region5: #{_forward_apply.1} parent=1 // pred_fallthru
      _
    // Predicated region
    $region6: #{_forward_apply.1} parent=1 // pred_check
      _
    $region7: #{_forward_apply.1} parent=1 // pred_check_branch
      %17 = sbr.rel (0) target = $region9
    $region8: #{_forward_apply.1} parent=1 // pred_region
      %s19 = ssub.s32 512, 512
      %20 = vsyncadd [#allocation3], %s19
      %s21 = sshll.u32 [#allocation2], 4
      %s22 = int_to_ptr.vmem [resolvable:$true] %s21
      %27 = dma.hbm_to_vmem [thread:$0]  %s1, 512, %s22, [#allocation3], 128, 128, 8
    $region9: #{_forward_apply.1} parent=1 // pred_fallthru
      _
    // Predicated region
    $region10: #{_forward_apply.1} parent=1 // pred_check
      _
    $region11: #{_forward_apply.1} parent=1 // pred_check_branch
      %29 = sbr.rel (0) target = $region13
    $region12: #{_forward_apply.1} parent=1 // pred_region
      _
    $region13: #{_forward_apply.1} parent=1 // pred_fallthru
      _
    // Predicated region
    $region14: #{_forward_apply.1} parent=1 // pred_check
      _
    $region15: #{_forward_apply.1} parent=1 // pred_check_branch
      %31 = sbr.rel (0) target = $region17
    $region16: #{_forward_apply.1} parent=1 // pred_region
      %s33 = ssub.s32 4096, 4096
      %34 = vsyncadd [#allocation5], %s33
      %s35 = sshll.u32 [#allocation4], 4
      %s36 = int_to_ptr.vmem [resolvable:$true] %s35
      %41 = dma.hbm_to_vmem [thread:$0]  %s3, 4096, %s36, [#allocation5], 128, 128, 8
    $region17: #{_forward_apply.1} parent=1 // pred_fallthru
      _
    // Predicated region
    $region18: #{_forward_apply.1} parent=1 // pred_check
      _
    $region19: #{_forward_apply.1} parent=1 // pred_check_branch
      %43 = sbr.rel (0) target = $region21
    $region20: #{_forward_apply.1} parent=1 // pred_region
      _
    $region21: #{_forward_apply.1} parent=1 // pred_fallthru
      _
    // Predicated region
    $region22: #{_forward_apply.1} parent=1 // pred_check
      _
    $region23: #{_forward_apply.1} parent=1 // pred_check_branch
      %45 = sbr.rel (0) target = $region25
    $region24: #{_forward_apply.1} parent=1 // pred_region
      %s47 = ssub.s32 2048, 2048
      %48 = vsyncadd [#allocation5], %s47
      %s49 = sshll.u32 [#allocation6], 4
      %s50 = int_to_ptr.vmem [resolvable:$true] %s49
      %55 = dma.hbm_to_vmem [thread:$0]  %s5, 2048, %s50, [#allocation5], 64, 64, 4
    $region25: #{_forward_apply.1} parent=1 // pred_fallthru
      _
    // Predicated region
    $region26: #{_forward_apply.1} parent=1 // pred_check
      _
    $region27: #{_forward_apply.1} parent=1 // pred_check_branch
      %57 = sbr.rel (0) target = $region29
    $region28: #{_forward_apply.1} parent=1 // pred_region
      _
    $region29: #{_forward_apply.1} parent=1 // pred_fallthru
      _
    // Predicated region
    $region30: #{_forward_apply.1} parent=1 // pred_check
      _
    $region31: #{_forward_apply.1} parent=1 // pred_check_branch
      %59 = sbr.rel (0) target = $region33
    $region32: #{_forward_apply.1} parent=1 // pred_region
      %60 = dma.done [#allocation3], 512
    $region33: #{_forward_apply.1} parent=1 // pred_fallthru
      _
    // Predicated region
    $region34: #{_forward_apply.1} parent=1 // pred_check
      _
    $region35: #{_forward_apply.1} parent=1 // pred_check_branch
      %62 = sbr.rel (0) target = $region37
    $region36: #{_forward_apply.1} parent=1 // pred_region
      %63 = dma.done [#allocation5], 4096
    $region37: #{_forward_apply.1} parent=1 // pred_fallthru
      _
    // Predicated region
    $region38: #{_forward_apply.1} parent=1 // pred_check
      _
    $region39: #{_forward_apply.1} parent=1 // pred_check_branch
      %65 = sbr.rel (0) target = $region41
    $region40: #{_forward_apply.1} parent=1 // pred_region
      %66 = dma.done [#allocation5], 2048
    $region41: #{_forward_apply.1} parent=1 // pred_fallthru
      _
    %v68 = vld [vmem:[%s0] sm:$0xf]
    %v69 = vld [vmem:[#allocation2] sm:$0xff]
    %v70 = vld [vmem:[#allocation2 + $0x8] sm:$0xff]
    %v71 = vld [vmem:[#allocation2 + $0x10] sm:$0xff]
    %v72 = vld [vmem:[#allocation2 + $0x18] sm:$0xff]
    %v73 = vld [vmem:[%s2] sm:$0x3]
    %v75 = vlaneseq
    %v76 = vshrl.u32 %v75, 7
    %v77 = vsub.s32 0, %v76
    %v78 = vrot.slane %v73, %v77
    %v79 = vlaneseq
    %v80 = vshrl.u32 %v79, 7
    %v81 = vsub.s32 1, %v80
    %v82 = vrot.slane %v73, %v81
    %v89 = vunpack.c.l.b16 %v69
    %v90 = vunpack.c.h.b16 %v69
    %v91 = vunpack.c.l.b16 %v70
    %v92 = vunpack.c.h.b16 %v70
    %v93 = vunpack.c.l.b16 %v71
    %v94 = vunpack.c.h.b16 %v71
    %v95 = vunpack.c.l.b16 %v72
    %v96 = vunpack.c.h.b16 %v72
    %v97 = vpack.c.b16 %v91, %v89
    %v98 = vpack.c.b16 %v92, %v90
    %v99 = vpack.c.b16 %v95, %v93
    %v100 = vpack.c.b16 %v96, %v94
    %vm105 = vcmask 261120
    %v107 = vsel %vm105, %v68, 0
    %109 = vmatprep.subr.bf16.mxu0 0
    %110 = vmatpush1.bf16.msra.mxu0 0
    %111 = vmatprep.subr.bf16.mxu0 0
    %112 = vmatpush1.bf16.msra.mxu0 0
    %113 = vmatprep.subr.bf16.mxu0 0
    %114 = vmatpush1.bf16.msra.mxu0 0
    %115 = vmatprep.subr.bf16.mxu0 0
    %116 = vmatpush1.bf16.msra.mxu0 0
    %117 = vmatprep.subr.bf16.mxu0 0
    %118 = vmatpush1.bf16.msra.mxu0 0
    %119 = vmatprep.subr.bf16.mxu0 0
    %120 = vmatpush1.bf16.msra.mxu0 0
    %121 = vmatprep.subr.bf16.mxu0 %v100
    %122 = vmatpush1.bf16.msra.mxu0 %v99
    %123 = vmatprep.subr.bf16.mxu0 %v98
    %124 = vmatpush1.bf16.msra.mxu0 %v97
    %125 = vmatprep.subr.bf16.mxu0 0
    %126 = vmatpush2.bf16.msra.mxu0 0
    %127 = vmatprep.subr.bf16.mxu0 0
    %128 = vmatpush2.bf16.msra.mxu0 0
    %129 = vmatprep.subr.bf16.mxu0 0
    %130 = vmatpush2.bf16.msra.mxu0 0
    %131 = vmatprep.subr.bf16.mxu0 0
    %132 = vmatpush2.bf16.msra.mxu0 0
    %133 = vmatprep.subr.bf16.mxu0 0
    %134 = vmatpush2.bf16.msra.mxu0 0
    %135 = vmatprep.subr.bf16.mxu0 0
    %136 = vmatpush2.bf16.msra.mxu0 0
    %137 = vmatprep.subr.bf16.mxu0 0
    %138 = vmatpush2.bf16.msra.mxu0 0
    %139 = vmatprep.subr.bf16.mxu0 0
    %140 = vmatpush2.bf16.msra.mxu0 0
    %141 = vmatprep.mubr.bf16.mxu0 0
    %142 = vmatmul.mubr.bf16.gmra.mxu0 %v107
    %v143 = vpop.f32.mrf.mxu0
    %v144 = vadd.f32 %v78, %v143
    %v145 = vpop.f32.mrf.mxu0
    %v146 = vadd.f32 %v82, %v145
    %v147 = vpop.f32.mrf.mxu0
    %v148 = vpop.f32.mrf.mxu0
    %149 = vdwg.mxu0
    %v150 = vmax.f32 %v144, 0.0
    %v151 = vmax.f32 %v146, 0.0
    %v152 = vpack.c.bf16 %v150, %v150
    %v153 = vpack.c.bf16 %v151, %v151
    %v154 = vld [vmem:[#allocation4] sm:$0xff]
    %v155 = vld [vmem:[#allocation4 + $0x8] sm:$0xff]
    %v156 = vld [vmem:[#allocation4 + $0x10] sm:$0xff]
    %v157 = vld [vmem:[#allocation4 + $0x18] sm:$0xff]
    %v158 = vld [vmem:[#allocation4 + $0x20] sm:$0xff]
    %v159 = vld [vmem:[#allocation4 + $0x28] sm:$0xff]
    %v160 = vld [vmem:[#allocation4 + $0x30] sm:$0xff]
    %v161 = vld [vmem:[#allocation4 + $0x38] sm:$0xff]
    %v162 = vld [vmem:[#allocation4 + $0x40] sm:$0xff]
    %v163 = vld [vmem:[#allocation4 + $0x48] sm:$0xff]
    %v164 = vld [vmem:[#allocation4 + $0x50] sm:$0xff]
    %v165 = vld [vmem:[#allocation4 + $0x58] sm:$0xff]
    %v166 = vld [vmem:[#allocation4 + $0x60] sm:$0xff]
    %v167 = vld [vmem:[#allocation4 + $0x68] sm:$0xff]
    %v168 = vld [vmem:[#allocation4 + $0x70] sm:$0xff]
    %v169 = vld [vmem:[#allocation4 + $0x78] sm:$0xff]
    %v170 = vld [vmem:[#allocation4 + $0x80] sm:$0xff]
    %v171 = vld [vmem:[#allocation4 + $0x88] sm:$0xff]
    %v172 = vld [vmem:[#allocation4 + $0x90] sm:$0xff]
    %v173 = vld [vmem:[#allocation4 + $0x98] sm:$0xff]
    %v174 = vld [vmem:[#allocation4 + $0xa0] sm:$0xff]
    %v175 = vld [vmem:[#allocation4 + $0xa8] sm:$0xff]
    %v176 = vld [vmem:[#allocation4 + $0xb0] sm:$0xff]
    %v177 = vld [vmem:[#allocation4 + $0xb8] sm:$0xff]
    %v178 = vld [vmem:[#allocation4 + $0xc0] sm:$0xff]
    %v179 = vld [vmem:[#allocation4 + $0xc8] sm:$0xff]
    %v180 = vld [vmem:[#allocation4 + $0xd0] sm:$0xff]
    %v181 = vld [vmem:[#allocation4 + $0xd8] sm:$0xff]
    %v182 = vld [vmem:[#allocation4 + $0xe0] sm:$0xff]
    %v183 = vld [vmem:[#allocation4 + $0xe8] sm:$0xff]
    %v184 = vld [vmem:[#allocation4 + $0xf0] sm:$0xff]
    %v185 = vld [vmem:[#allocation4 + $0xf8] sm:$0xff]
    %v186 = vld [vmem:[%s4] sm:$0x3]
    %v188 = vlaneseq
    %v189 = vshrl.u32 %v188, 7
    %v190 = vsub.s32 0, %v189
    %v191 = vrot.slane %v186, %v190
    %v192 = vlaneseq
    %v193 = vshrl.u32 %v192, 7
    %v194 = vsub.s32 1, %v193
    %v195 = vrot.slane %v186, %v194
    %v230 = vunpack.c.l.b16 %v154
    %v231 = vunpack.c.h.b16 %v154
    %v232 = vunpack.c.l.b16 %v155
    %v233 = vunpack.c.h.b16 %v155
    %v234 = vunpack.c.l.b16 %v156
    %v235 = vunpack.c.h.b16 %v156
    %v236 = vunpack.c.l.b16 %v157
    %v237 = vunpack.c.h.b16 %v157
    %v238 = vunpack.c.l.b16 %v158
    %v239 = vunpack.c.h.b16 %v158
    %v240 = vunpack.c.l.b16 %v159
    %v241 = vunpack.c.h.b16 %v159
    %v242 = vunpack.c.l.b16 %v160
    %v243 = vunpack.c.h.b16 %v160
    %v244 = vunpack.c.l.b16 %v161
    %v245 = vunpack.c.h.b16 %v161
    %v246 = vunpack.c.l.b16 %v162
    %v247 = vunpack.c.h.b16 %v162
    %v248 = vunpack.c.l.b16 %v163
    %v249 = vunpack.c.h.b16 %v163
    %v250 = vunpack.c.l.b16 %v164
    %v251 = vunpack.c.h.b16 %v164
    %v252 = vunpack.c.l.b16 %v165
    %v253 = vunpack.c.h.b16 %v165
    %v254 = vunpack.c.l.b16 %v166
    %v255 = vunpack.c.h.b16 %v166
    %v256 = vunpack.c.l.b16 %v167
    %v257 = vunpack.c.h.b16 %v167
    %v258 = vunpack.c.l.b16 %v168
    %v259 = vunpack.c.h.b16 %v168
    %v260 = vunpack.c.l.b16 %v169
    %v261 = vunpack.c.h.b16 %v169
    %v262 = vunpack.c.l.b16 %v170
    %v263 = vunpack.c.h.b16 %v170
    %v264 = vunpack.c.l.b16 %v171
    %v265 = vunpack.c.h.b16 %v171
    %v266 = vunpack.c.l.b16 %v172
    %v267 = vunpack.c.h.b16 %v172
    %v268 = vunpack.c.l.b16 %v173
    %v269 = vunpack.c.h.b16 %v173
    %v270 = vunpack.c.l.b16 %v174
    %v271 = vunpack.c.h.b16 %v174
    %v272 = vunpack.c.l.b16 %v175
    %v273 = vunpack.c.h.b16 %v175
    %v274 = vunpack.c.l.b16 %v176
    %v275 = vunpack.c.h.b16 %v176
    %v276 = vunpack.c.l.b16 %v177
    %v277 = vunpack.c.h.b16 %v177
    %v278 = vunpack.c.l.b16 %v178
    %v279 = vunpack.c.h.b16 %v178
    %v280 = vunpack.c.l.b16 %v179
    %v281 = vunpack.c.h.b16 %v179
    %v282 = vunpack.c.l.b16 %v180
    %v283 = vunpack.c.h.b16 %v180
    %v284 = vunpack.c.l.b16 %v181
    %v285 = vunpack.c.h.b16 %v181
    %v286 = vunpack.c.l.b16 %v182
    %v287 = vunpack.c.h.b16 %v182
    %v288 = vunpack.c.l.b16 %v183
    %v289 = vunpack.c.h.b16 %v183
    %v290 = vunpack.c.l.b16 %v184
    %v291 = vunpack.c.h.b16 %v184
    %v292 = vunpack.c.l.b16 %v185
    %v293 = vunpack.c.h.b16 %v185
    %v294 = vpack.c.b16 %v232, %v230
    %v295 = vpack.c.b16 %v233, %v231
    %v296 = vpack.c.b16 %v236, %v234
    %v297 = vpack.c.b16 %v237, %v235
    %v298 = vpack.c.b16 %v240, %v238
    %v299 = vpack.c.b16 %v241, %v239
    %v300 = vpack.c.b16 %v244, %v242
    %v301 = vpack.c.b16 %v245, %v243
    %v302 = vpack.c.b16 %v248, %v246
    %v303 = vpack.c.b16 %v249, %v247
    %v304 = vpack.c.b16 %v252, %v250
    %v305 = vpack.c.b16 %v253, %v251
    %v306 = vpack.c.b16 %v256, %v254
    %v307 = vpack.c.b16 %v257, %v255
    %v308 = vpack.c.b16 %v260, %v258
    %v309 = vpack.c.b16 %v261, %v259
    %v310 = vpack.c.b16 %v264, %v262
    %v311 = vpack.c.b16 %v265, %v263
    %v312 = vpack.c.b16 %v268, %v266
    %v313 = vpack.c.b16 %v269, %v267
    %v314 = vpack.c.b16 %v272, %v270
    %v315 = vpack.c.b16 %v273, %v271
    %v316 = vpack.c.b16 %v276, %v274
    %v317 = vpack.c.b16 %v277, %v275
    %v318 = vpack.c.b16 %v280, %v278
    %v319 = vpack.c.b16 %v281, %v279
    %v320 = vpack.c.b16 %v284, %v282
    %v321 = vpack.c.b16 %v285, %v283
    %v322 = vpack.c.b16 %v288, %v286
    %v323 = vpack.c.b16 %v289, %v287
    %v324 = vpack.c.b16 %v292, %v290
    %v325 = vpack.c.b16 %v293, %v291
    %358 = vmatprep.subr.bf16.mxu0 %v309
    %359 = vmatpush1.bf16.msra.mxu0 %v308
    %360 = vmatprep.subr.bf16.mxu0 %v307
    %361 = vmatpush1.bf16.msra.mxu0 %v306
    %362 = vmatprep.subr.bf16.mxu0 %v305
    %363 = vmatpush1.bf16.msra.mxu0 %v304
    %364 = vmatprep.subr.bf16.mxu0 %v303
    %365 = vmatpush1.bf16.msra.mxu0 %v302
    %366 = vmatprep.subr.bf16.mxu0 %v301
    %367 = vmatpush1.bf16.msra.mxu0 %v300
    %368 = vmatprep.subr.bf16.mxu0 %v299
    %369 = vmatpush1.bf16.msra.mxu0 %v298
    %370 = vmatprep.subr.bf16.mxu0 %v297
    %371 = vmatpush1.bf16.msra.mxu0 %v296
    %372 = vmatprep.subr.bf16.mxu0 %v295
    %373 = vmatpush1.bf16.msra.mxu0 %v294
    %374 = vmatprep.subr.bf16.mxu0 %v325
    %375 = vmatpush2.bf16.msra.mxu0 %v324
    %376 = vmatprep.subr.bf16.mxu0 %v323
    %377 = vmatpush2.bf16.msra.mxu0 %v322
    %378 = vmatprep.subr.bf16.mxu0 %v321
    %379 = vmatpush2.bf16.msra.mxu0 %v320
    %380 = vmatprep.subr.bf16.mxu0 %v319
    %381 = vmatpush2.bf16.msra.mxu0 %v318
    %382 = vmatprep.subr.bf16.mxu0 %v317
    %383 = vmatpush2.bf16.msra.mxu0 %v316
    %384 = vmatprep.subr.bf16.mxu0 %v315
    %385 = vmatpush2.bf16.msra.mxu0 %v314
    %386 = vmatprep.subr.bf16.mxu0 %v313
    %387 = vmatpush2.bf16.msra.mxu0 %v312
    %388 = vmatprep.subr.bf16.mxu0 %v311
    %389 = vmatpush2.bf16.msra.mxu0 %v310
    %390 = vmatprep.mubr.bf16.mxu0 %v153
    %391 = vmatmul.mubr.bf16.gmra.mxu0 %v152
    %v392 = vpop.f32.mrf.mxu0
    %v393 = vadd.f32 %v191, %v392
    %v394 = vpop.f32.mrf.mxu0
    %v395 = vadd.f32 %v195, %v394
    %v396 = vpop.f32.mrf.mxu0
    %v397 = vpop.f32.mrf.mxu0
    %398 = vdwg.mxu0
    %v399 = vmax.f32 %v393, 0.0
    %v400 = vmax.f32 %v395, 0.0
    %v401 = vpack.c.bf16 %v399, %v399
    %v402 = vpack.c.bf16 %v400, %v400
    %v403 = vld [vmem:[#allocation6] sm:$0xf]
    %v404 = vld [vmem:[#allocation6 + $0x4] sm:$0xf]
    %v405 = vld [vmem:[#allocation6 + $0x8] sm:$0xf]
    %v406 = vld [vmem:[#allocation6 + $0xc] sm:$0xf]
    %v407 = vld [vmem:[#allocation6 + $0x10] sm:$0xf]
    %v408 = vld [vmem:[#allocation6 + $0x14] sm:$0xf]
    %v409 = vld [vmem:[#allocation6 + $0x18] sm:$0xf]
    %v410 = vld [vmem:[#allocation6 + $0x1c] sm:$0xf]
    %v411 = vld [vmem:[#allocation6 + $0x20] sm:$0xf]
    %v412 = vld [vmem:[#allocation6 + $0x24] sm:$0xf]
    %v413 = vld [vmem:[#allocation6 + $0x28] sm:$0xf]
    %v414 = vld [vmem:[#allocation6 + $0x2c] sm:$0xf]
    %v415 = vld [vmem:[#allocation6 + $0x30] sm:$0xf]
    %v416 = vld [vmem:[#allocation6 + $0x34] sm:$0xf]
    %v417 = vld [vmem:[#allocation6 + $0x38] sm:$0xf]
    %v418 = vld [vmem:[#allocation6 + $0x3c] sm:$0xf]
    %v419 = vld [vmem:[#allocation6 + $0x40] sm:$0xf]
    %v420 = vld [vmem:[#allocation6 + $0x44] sm:$0xf]
    %v421 = vld [vmem:[#allocation6 + $0x48] sm:$0xf]
    %v422 = vld [vmem:[#allocation6 + $0x4c] sm:$0xf]
    %v423 = vld [vmem:[#allocation6 + $0x50] sm:$0xf]
    %v424 = vld [vmem:[#allocation6 + $0x54] sm:$0xf]
    %v425 = vld [vmem:[#allocation6 + $0x58] sm:$0xf]
    %v426 = vld [vmem:[#allocation6 + $0x5c] sm:$0xf]
    %v427 = vld [vmem:[#allocation6 + $0x60] sm:$0xf]
    %v428 = vld [vmem:[#allocation6 + $0x64] sm:$0xf]
    %v429 = vld [vmem:[#allocation6 + $0x68] sm:$0xf]
    %v430 = vld [vmem:[#allocation6 + $0x6c] sm:$0xf]
    %v431 = vld [vmem:[#allocation6 + $0x70] sm:$0xf]
    %v432 = vld [vmem:[#allocation6 + $0x74] sm:$0xf]
    %v433 = vld [vmem:[#allocation6 + $0x78] sm:$0xf]
    %v434 = vld [vmem:[#allocation6 + $0x7c] sm:$0xf]
    %v435 = vld [vmem:[%s6] sm:$0x1]
    %v437 = vlaneseq
    %v438 = vshrl.u32 %v437, 7
    %v439 = vsub.s32 0, %v438
    %v440 = vrot.slane %v435, %v439
    %v474 = vunpack.c.l.b16 %v403
    %v475 = vunpack.c.l.b16 %v404
    %v476 = vunpack.c.l.b16 %v405
    %v477 = vunpack.c.l.b16 %v406
    %v478 = vunpack.c.l.b16 %v407
    %v479 = vunpack.c.l.b16 %v408
    %v480 = vunpack.c.l.b16 %v409
    %v481 = vunpack.c.l.b16 %v410
    %v482 = vunpack.c.l.b16 %v411
    %v483 = vunpack.c.l.b16 %v412
    %v484 = vunpack.c.l.b16 %v413
    %v485 = vunpack.c.l.b16 %v414
    %v486 = vunpack.c.l.b16 %v415
    %v487 = vunpack.c.l.b16 %v416
    %v488 = vunpack.c.l.b16 %v417
    %v489 = vunpack.c.l.b16 %v418
    %v490 = vunpack.c.l.b16 %v419
    %v491 = vunpack.c.l.b16 %v420
    %v492 = vunpack.c.l.b16 %v421
    %v493 = vunpack.c.l.b16 %v422
    %v494 = vunpack.c.l.b16 %v423
    %v495 = vunpack.c.l.b16 %v424
    %v496 = vunpack.c.l.b16 %v425
    %v497 = vunpack.c.l.b16 %v426
    %v498 = vunpack.c.l.b16 %v427
    %v499 = vunpack.c.l.b16 %v428
    %v500 = vunpack.c.l.b16 %v429
    %v501 = vunpack.c.l.b16 %v430
    %v502 = vunpack.c.l.b16 %v431
    %v503 = vunpack.c.l.b16 %v432
    %v504 = vunpack.c.l.b16 %v433
    %v505 = vunpack.c.l.b16 %v434
    %v506 = vpack.c.b16 %v475, %v474
    %v507 = vpack.c.b16 %v477, %v476
    %v508 = vpack.c.b16 %v479, %v478
    %v509 = vpack.c.b16 %v481, %v480
    %v510 = vpack.c.b16 %v483, %v482
    %v511 = vpack.c.b16 %v485, %v484
    %v512 = vpack.c.b16 %v487, %v486
    %v513 = vpack.c.b16 %v489, %v488
    %v514 = vpack.c.b16 %v491, %v490
    %v515 = vpack.c.b16 %v493, %v492
    %v516 = vpack.c.b16 %v495, %v494
    %v517 = vpack.c.b16 %v497, %v496
    %v518 = vpack.c.b16 %v499, %v498
    %v519 = vpack.c.b16 %v501, %v500
    %v520 = vpack.c.b16 %v503, %v502
    %v521 = vpack.c.b16 %v505, %v504
    %538 = vmatprep.subr.bf16.mxu0 0
    %539 = vmatpush1.bf16.msra.mxu0 %v513
    %540 = vmatprep.subr.bf16.mxu0 0
    %541 = vmatpush1.bf16.msra.mxu0 %v512
    %542 = vmatprep.subr.bf16.mxu0 0
    %543 = vmatpush1.bf16.msra.mxu0 %v511
    %544 = vmatprep.subr.bf16.mxu0 0
    %545 = vmatpush1.bf16.msra.mxu0 %v510
    %546 = vmatprep.subr.bf16.mxu0 0
    %547 = vmatpush1.bf16.msra.mxu0 %v509
    %548 = vmatprep.subr.bf16.mxu0 0
    %549 = vmatpush1.bf16.msra.mxu0 %v508
    %550 = vmatprep.subr.bf16.mxu0 0
    %551 = vmatpush1.bf16.msra.mxu0 %v507
    %552 = vmatprep.subr.bf16.mxu0 0
    %553 = vmatpush1.bf16.msra.mxu0 %v506
    %554 = vmatprep.subr.bf16.mxu0 0
    %555 = vmatpush2.bf16.msra.mxu0 %v521
    %556 = vmatprep.subr.bf16.mxu0 0
    %557 = vmatpush2.bf16.msra.mxu0 %v520
    %558 = vmatprep.subr.bf16.mxu0 0
    %559 = vmatpush2.bf16.msra.mxu0 %v519
    %560 = vmatprep.subr.bf16.mxu0 0
    %561 = vmatpush2.bf16.msra.mxu0 %v518
    %562 = vmatprep.subr.bf16.mxu0 0
    %563 = vmatpush2.bf16.msra.mxu0 %v517
    %564 = vmatprep.subr.bf16.mxu0 0
    %565 = vmatpush2.bf16.msra.mxu0 %v516
    %566 = vmatprep.subr.bf16.mxu0 0
    %567 = vmatpush2.bf16.msra.mxu0 %v515
    %568 = vmatprep.subr.bf16.mxu0 0
    %569 = vmatpush2.bf16.msra.mxu0 %v514
    %570 = vmatprep.mubr.bf16.mxu0 %v402
    %571 = vmatmul.mubr.bf16.gmra.mxu0 %v401
    %v572 = vpop.f32.mrf.mxu0
    %v573 = vadd.f32 %v440, %v572
    %v574 = vpop.f32.mrf.mxu0
    %v575 = vpop.f32.mrf.mxu0
    %v576 = vpop.f32.mrf.mxu0
    %577 = vdwg.mxu0
    %578 = vst [vmem:[%s7] sm:$0xff] %v573
    // Predicated region
    $region42: #{_forward_apply.1} parent=1 // pred_check
      _
    $region43: #{_forward_apply.1} parent=1 // pred_check_branch
      %580 = sbr.rel (0) target = $region45
    $region44: #{_forward_apply.1} parent=1 // pred_region
      _
    $region45: #{_forward_apply.1} parent=1 // pred_fallthru
      _
    // Predicated region
    $region46: #{_forward_apply.1} parent=1 // pred_check
      _
    $region47: #{_forward_apply.1} parent=1 // pred_check_branch
      %582 = sbr.rel (0) target = $region49
    $region48: #{_forward_apply.1} parent=1 // pred_region
      _
    $region49: #{_forward_apply.1} parent=1 // pred_fallthru
      _
    %583 = vsyncpa [#allocation3], 1
    %584 = vsyncpa [#allocation5], 1

</llo_original>
